<compile_context>
chip_gen: v7x
topology: tpu7x:2x2x1
jax: 0.10.0
libtpu: 0.0.40
codegen_flags: <defaults>
</compile_context>

<pallas_src>
import functools

import jax
import jax.numpy as jnp
from jax.experimental import pallas as pl
from jax.experimental.pallas import tpu as pltpu


def _dice_partial_kernel(x_ref, t_ref, inter_ref, denom_ref, *,
                         s_total, block_s, needs_mask):
    """Accumulate per-row sum(x*t) and sum(x)+sum(t) over the S grid axis."""
    s = pl.program_id(1)

    @pl.when(s == 0)
    def _():
        inter_ref[...] = jnp.zeros_like(inter_ref)
        denom_ref[...] = jnp.zeros_like(denom_ref)

    x = x_ref[...].astype(jnp.float32)
    t = t_ref[...].astype(jnp.float32)
    if needs_mask:
        # Ragged tail: padding region of a partial block is undefined -> mask.
        lane = jax.lax.broadcasted_iota(jnp.int32, x.shape, 1)
        valid = (s * block_s + lane) < s_total
        x = jnp.where(valid, x, 0.0)
        t = jnp.where(valid, t, 0.0)

    inter_ref[...] += jnp.sum(x * t, axis=1, keepdims=True)
    denom_ref[...] += jnp.sum(x + t, axis=1, keepdims=True)


def _choose_tiles(nc, s, bytes_per_elem, input_budget):
    """Pick (tile_nc, block_s) so the double-buffered input tiles fit budget."""
    # double-buffered input footprint = 2 buffers * tile_nc * block_s * bpe
    max_rows = max(8, input_budget // (2 * 128 * bytes_per_elem))
    if nc <= max_rows:
        tile_nc = nc
    else:
        tile_nc = None
        d = (min(nc, max_rows) // 8) * 8
        while d >= 8:                      # largest multiple-of-8 divisor
            if nc % d == 0:
                tile_nc = d
                break
            d -= 8
        if tile_nc is None:                # no legal divisor: full extent
            tile_nc = nc
    max_lanes = input_budget // (2 * tile_nc * bytes_per_elem)
    max_lanes = max(128, (max_lanes // 128) * 128)
    block_s = s if max_lanes >= s else max_lanes
    return tile_nc, block_s


def dice_loss(inp, tgt, weight=None, smooth=0.2,
              input_vmem_budget=24 << 20):
    """Pallas implementation of DiceLoss.forward(input, target)."""
    N, C = int(tgt.shape[0]), int(tgt.shape[1])
    NC = N * C

    # Contiguous reshape only: no pad / upcast copies through HBM.
    x2 = inp.reshape(NC, -1)
    t2 = tgt.reshape(NC, -1)
    S = int(x2.shape[1])

    bpe = x2.dtype.itemsize + t2.dtype.itemsize
    tile_nc, block_s = _choose_tiles(NC, S, bpe, int(input_vmem_budget))
    num_s = -(-S // block_s)
    needs_mask = (S % block_s) != 0
    grid = (NC // tile_nc, num_s)

    pipeline_bytes = 2 * tile_nc * block_s * bpe
    vmem_limit = int(min(max(32 << 20, pipeline_bytes + (16 << 20)), 128 << 20))

    kernel = functools.partial(_dice_partial_kernel, s_total=S,
                               block_s=block_s, needs_mask=needs_mask)
    inter, denom = pl.pallas_call(
        kernel,
        out_shape=(jax.ShapeDtypeStruct((NC, 1), jnp.float32),
                   jax.ShapeDtypeStruct((NC, 1), jnp.float32)),
        grid_spec=pltpu.PrefetchScalarGridSpec(
            num_scalar_prefetch=0,
            grid=grid,
            in_specs=[
                pl.BlockSpec((tile_nc, block_s), lambda i, s: (i, s)),
                pl.BlockSpec((tile_nc, block_s), lambda i, s: (i, s)),
            ],
            out_specs=[
                pl.BlockSpec((tile_nc, 1), lambda i, s: (i, 0)),
                pl.BlockSpec((tile_nc, 1), lambda i, s: (i, 0)),
            ],
        ),
        compiler_params=pltpu.CompilerParams(
            dimension_semantics=("parallel", "arbitrary"),
            vmem_limit_bytes=vmem_limit),
    )(x2, t2)

    # Tiny epilogue in XLA: per-(n,c) dice ratio, channel weights, final scalar.
    inter = inter[:, 0].reshape(N, C)
    denom = denom[:, 0].reshape(N, C)
    if weight is None:
        # self.weight is None in the module -> uniform 1/C per channel.
        w_c = jnp.full((C,), 1.0 / C, dtype=jnp.float32)
    else:
        w_c = jnp.asarray(weight, dtype=jnp.float32).reshape(C)
    ratio = (2.0 * inter + smooth) / (denom + smooth)
    return 1.0 - jnp.sum(ratio * w_c[None, :]) / N


def _dice_loss_ref(inp, tgt, smooth=0.2):
    N, C = tgt.shape[0], tgt.shape[1]
    w = jnp.full((C,), 1.0 / C, dtype=jnp.float32)
    x = inp.reshape(N, C, -1).astype(jnp.float32)
    t = tgt.reshape(N, C, -1).astype(jnp.float32)
    inter = (x * t).sum(2)
    loss = (2.0 * inter + smooth) / (x.sum(2) + t.sum(2) + smooth)
    loss = loss * w[None, :]
    return 1.0 - loss.sum() / N


if __name__ == "__main__":
    key = jax.random.PRNGKey(0)
    k1, k2, k3, k4 = jax.random.split(key, 4)

    # Case 1: canonical small NCHW shape, single tile, no masking.
    N, C, H, W = 2, 4, 16, 16
    x = jax.random.uniform(k1, (N, C, H, W), dtype=jnp.float32)
    t = (jax.random.uniform(k2, (N, C, H, W), dtype=jnp.float32) > 0.5
         ).astype(jnp.float32)
    loss = jax.block_until_ready(dice_loss(x, t))
    ref = _dice_loss_ref(x, t)
    assert jnp.allclose(loss, ref, atol=1e-5, rtol=1e-5), (loss, ref)

    # Case 2: ragged S (not a multiple of 128) + row tiling + both grid axes,
    # forced by a tiny VMEM budget -> exercises mask / multi-tile / parallel.
    N2, C2, H2, W2 = 2, 8, 10, 20          # NC=16, S=200
    x2 = jax.random.uniform(k3, (N2, C2, H2, W2), dtype=jnp.float32)
    t2 = (jax.random.uniform(k4, (N2, C2, H2, W2), dtype=jnp.float32) > 0.5
          ).astype(jnp.float32)
    loss2 = jax.block_until_ready(
        dice_loss(x2, t2, input_vmem_budget=16 * 1024))
    ref2 = _dice_loss_ref(x2, t2)
    assert jnp.allclose(loss2, ref2, atol=1e-5, rtol=1e-5), (loss2, ref2)

    # Case 3: bf16 input streamed in its native dtype (no wrapper upcast).
    x3 = x.astype(jnp.bfloat16)
    loss3 = jax.block_until_ready(dice_loss(x3, t))
    ref3 = _dice_loss_ref(x3, t)
    assert jnp.allclose(loss3, ref3, atol=1e-4, rtol=1e-4), (loss3, ref3)

    print("KERNEL_OK")
</pallas_src>

<mosaic_0001>
module attributes {stable_mosaic.version = 11 : i64} {
  func.func @_dice_partial_kernel(%arg0: i32, %arg1: i32, %arg2: memref<8x256xf32, #tpu.memory_space<vmem>>, %arg3: memref<8x256xf32, #tpu.memory_space<vmem>>, %arg4: memref<8x1xf32, #tpu.memory_space<vmem>>, %arg5: memref<8x1xf32, #tpu.memory_space<vmem>>) attributes {dimension_semantics = [#tpu.dimension_semantics<parallel>, #tpu.dimension_semantics<arbitrary>], iteration_bounds = array<i64: 1, 1>, scalar_prefetch = 0 : i64, scratch_operands = 0 : i64, tpu.core_type = #tpu.core_type<tc>, window_params = [{transform_indices = @transform_0, window_bounds = array<i64: 8, 256>}, {transform_indices = @transform_1, window_bounds = array<i64: 8, 256>}, {transform_indices = @transform_2, window_bounds = array<i64: 8, 1>}, {transform_indices = @transform_3, window_bounds = array<i64: 8, 1>}]} {
    %c0_i32 = arith.constant 0 : i32
    %0 = arith.cmpi eq, %arg1, %c0_i32 : i32
    %1 = arith.extui %0 : i1 to i32
    %c0_i32_0 = arith.constant 0 : i32
    %2 = arith.cmpi ne, %1, %c0_i32_0 : i32
    scf.if %2 {
      %cst_13 = arith.constant 0.000000e+00 : f32
      %17 = vector.broadcast %cst_13 : f32 to vector<8x1xf32>
      %c0_14 = arith.constant 0 : index
      %c0_15 = arith.constant 0 : index
      %18 = vector.load %arg4[%c0_14, %c0_15] : memref<8x1xf32, #tpu.memory_space<vmem>>, vector<8x1xf32>
      tpu.vector_store %arg4[%c0_14, %c0_15], %17 {strides = array<i32>} : memref<8x1xf32, #tpu.memory_space<vmem>>, vector<8x1xf32>,
      %cst_16 = arith.constant 0.000000e+00 : f32
      %19 = vector.broadcast %cst_16 : f32 to vector<8x1xf32>
      %c0_17 = arith.constant 0 : index
      %c0_18 = arith.constant 0 : index
      %20 = vector.load %arg5[%c0_17, %c0_18] : memref<8x1xf32, #tpu.memory_space<vmem>>, vector<8x1xf32>
      tpu.vector_store %arg5[%c0_17, %c0_18], %19 {strides = array<i32>} : memref<8x1xf32, #tpu.memory_space<vmem>>, vector<8x1xf32>,
    } else {
    }
    %c0 = arith.constant 0 : index
    %c0_1 = arith.constant 0 : index
    %3 = vector.load %arg2[%c0, %c0_1] : memref<8x256xf32, #tpu.memory_space<vmem>>, vector<8x256xf32>
    %c0_2 = arith.constant 0 : index
    %c0_3 = arith.constant 0 : index
    %4 = vector.load %arg3[%c0_2, %c0_3] : memref<8x256xf32, #tpu.memory_space<vmem>>, vector<8x256xf32>
    %c0_4 = arith.constant 0 : index
    %c0_5 = arith.constant 0 : index
    %5 = vector.load %arg4[%c0_4, %c0_5] : memref<8x1xf32, #tpu.memory_space<vmem>>, vector<8x1xf32>
    %6 = arith.mulf %3, %4 : vector<8x256xf32>
    %cst = arith.constant dense<0.000000e+00> : vector<8xf32>
    %7 = vector.multi_reduction <add>, %6, %cst [1] : vector<8x256xf32> to vector<8xf32>
    %8 = vector.shape_cast %7 : vector<8xf32> to vector<8x1xf32>
    %9 = arith.addf %5, %8 : vector<8x1xf32>
    %c0_6 = arith.constant 0 : index
    %c0_7 = arith.constant 0 : index
    %10 = vector.load %arg4[%c0_6, %c0_7] : memref<8x1xf32, #tpu.memory_space<vmem>>, vector<8x1xf32>
    tpu.vector_store %arg4[%c0_6, %c0_7], %9 {strides = array<i32>} : memref<8x1xf32, #tpu.memory_space<vmem>>, vector<8x1xf32>,
    %c0_8 = arith.constant 0 : index
    %c0_9 = arith.constant 0 : index
    %11 = vector.load %arg5[%c0_8, %c0_9] : memref<8x1xf32, #tpu.memory_space<vmem>>, vector<8x1xf32>
    %12 = arith.addf %3, %4 : vector<8x256xf32>
    %cst_10 = arith.constant dense<0.000000e+00> : vector<8xf32>
    %13 = vector.multi_reduction <add>, %12, %cst_10 [1] : vector<8x256xf32> to vector<8xf32>
    %14 = vector.shape_cast %13 : vector<8xf32> to vector<8x1xf32>
    %15 = arith.addf %11, %14 : vector<8x1xf32>
    %c0_11 = arith.constant 0 : index
    %c0_12 = arith.constant 0 : index
    %16 = vector.load %arg5[%c0_11, %c0_12] : memref<8x1xf32, #tpu.memory_space<vmem>>, vector<8x1xf32>
    tpu.vector_store %arg5[%c0_11, %c0_12], %15 {strides = array<i32>} : memref<8x1xf32, #tpu.memory_space<vmem>>, vector<8x1xf32>,
    return
  }
  func.func @transform_0(%arg0: i32, %arg1: i32) -> (i32, i32) {
    %c0_i32 = arith.constant 0 : i32
    return %arg0, %arg1 : i32, i32
  }
  func.func @transform_1(%arg0: i32, %arg1: i32) -> (i32, i32) {
    %c0_i32 = arith.constant 0 : i32
    return %arg0, %arg1 : i32, i32
  }
  func.func @transform_2(%arg0: i32, %arg1: i32) -> (i32, i32) {
    %c0_i32 = arith.constant 0 : i32
    %c0_i32_0 = arith.constant 0 : i32
    return %arg0, %c0_i32 : i32, i32
  }
  func.func @transform_3(%arg0: i32, %arg1: i32) -> (i32, i32) {
    %c0_i32 = arith.constant 0 : i32
    %c0_i32_0 = arith.constant 0 : i32
    return %arg0, %c0_i32 : i32, i32
  }
}

</mosaic_0001>

<llo_original>
// kernel: tpu_custom_call.1
$region0: #{tpu_custom_call.1}
  #allocation0 [shape = 'u32[]', space=smem, size = 0x4, offset = 0x4, fixed_abs, tag = 'smem constant byte address 0x4 - core index']
  #allocation1 [shape = 'u32[144,128]{1,0:T(1,128)}', space=vmem, size = 0x12000, scoped, tag = 'internal scratch']
  %s0 = inlined_call_operand.hbm [shape: f32[8,256], index: 0, kind: input, shape index: {}]
  %s1 = inlined_call_operand.hbm [shape: f32[8,256], index: 1, kind: input, shape index: {}]
  %s2 = inlined_call_operand.vmem [shape: f32[8,1], index: 2, kind: output, shape index: {0}]
  %s3 = inlined_call_operand.vmem [shape: f32[8,1], index: 3, kind: output, shape index: {1}]
  %4 = xla_tuple %s2, %s3
  %s5 = sld [smem:[#allocation0]]
  $region38: #{tpu_custom_call.1} parent=0
    _
  %s7 = ssub.s32 1, %s5
  %s8 = scalar_select 0, %s7, %s5
  $region1: #{tpu_custom_call.1} parent=0
    #allocation2 [shape = 'u8[8192]{0}', space=vmem, size = 0x2000, scoped, tag = 'input window, operand 0, single buffered']
    #allocation3 [shape = 's32[1]{0}', space=sflag, size = 0x4, scoped, tag = 'scoped memory for tpu_custom_call.1']
    #allocation4 [shape = 'u8[8192]{0}', space=vmem, size = 0x2000, scoped, tag = 'input window, operand 1, single buffered']
    #allocation5 [shape = 's32[1]{0}', space=sflag, size = 0x4, scoped, tag = 'scoped memory for tpu_custom_call.1']
    %9 = vsyncpa [#allocation3], 0
    %10 = vsyncpa [#allocation5], 0
    // Predicated region
    $region2: #{tpu_custom_call.1} parent=1 // pred_check
      _
    $region3: #{tpu_custom_call.1} parent=1 // pred_check_branch
      %12 = sbr.rel (0) target = $region5
    $region4: #{tpu_custom_call.1} parent=1 // pred_region
      %s14 = ssub.s32 256, 256
      %15 = vsyncadd [#allocation3], %s14
      %s17 = sshll.u32 [#allocation2], 4
      %s18 = int_to_ptr.vmem [resolvable:$true] %s17
      %20 = dma.hbm_to_vmem [thread:$0]  %s0, 256, %s18, [#allocation3]
    $region5: #{tpu_custom_call.1} parent=1 // pred_fallthru
      _
    // Predicated region
    $region6: #{tpu_custom_call.1} parent=1 // pred_check
      _
    $region7: #{tpu_custom_call.1} parent=1 // pred_check_branch
      %22 = sbr.rel (0) target = $region9
    $region8: #{tpu_custom_call.1} parent=1 // pred_region
      %s24 = ssub.s32 256, 256
      %25 = vsyncadd [#allocation5], %s24
      %s27 = sshll.u32 [#allocation4], 4
      %s28 = int_to_ptr.vmem [resolvable:$true] %s27
      %30 = dma.hbm_to_vmem [thread:$0]  %s1, 256, %s28, [#allocation5]
    $region9: #{tpu_custom_call.1} parent=1 // pred_fallthru
      _
    // Predicated region
    $region10: #{tpu_custom_call.1} parent=1 // pred_check
      _
    $region11: #{tpu_custom_call.1} parent=1 // pred_check_branch
      %32 = sbr.rel (0) target = $region13
    $region12: #{tpu_custom_call.1} parent=1 // pred_region
      %33 = dma.done [#allocation3], 256
    $region13: #{tpu_custom_call.1} parent=1 // pred_fallthru
      _
    // Predicated region
    $region14: #{tpu_custom_call.1} parent=1 // pred_check
      _
    $region15: #{tpu_custom_call.1} parent=1 // pred_check_branch
      %35 = sbr.rel (0) target = $region17
    $region16: #{tpu_custom_call.1} parent=1 // pred_region
      %36 = dma.done [#allocation5], 256
    $region17: #{tpu_custom_call.1} parent=1 // pred_fallthru
      _
    %p37 = scmp.eq.s32.totalorder 0, 0
    // Predicated region
    $region18: #{tpu_custom_call.1} parent=1 // pred_check
      %p38 = pneg %p37
    $region19: #{tpu_custom_call.1} parent=1 // pred_check_branch
      %40 = sbr.rel (%p38) target = $region21
    $region20: #{tpu_custom_call.1} parent=1 // pred_region
      %vm41 = vcmask 7168
      %42 = vst.msk [vmem:[%s2] sm:$0xff] %vm41, 0.0
      %43 = vst.msk [vmem:[%s3] sm:$0xff] %vm41, 0.0
    $region21: #{tpu_custom_call.1} parent=1 // pred_fallthru
      _
    %v44 = vld [vmem:[#allocation2] sm:$0xff]
    %v45 = vld [vmem:[#allocation2 + $0x8] sm:$0xff]
    %v46 = vld [vmem:[#allocation4] sm:$0xff]
    %v47 = vld [vmem:[#allocation4 + $0x8] sm:$0xff]
    %v48 = vld [vmem:[%s2] sm:$0xff]
    %v49 = vmul.f32 %v44, %v46
    %v50 = vmul.f32 %v45, %v47
    %v51 = vadd.f32 %v49, %v50
    %52 = vadd.xlane.f32.xlu0 %v51
    %v53 = vpop.xlane.xlu0 %52
    %v54 = vadd.f32 %v48, %v53
    %vm55 = vcmask 7168
    %56 = vst.msk [vmem:[%s2] sm:$0xff] %vm55, %v54
    %v57 = vld [vmem:[%s3] sm:$0xff]
    %v58 = vadd.f32 %v44, %v46
    %v59 = vadd.f32 %v45, %v47
    %v60 = vadd.f32 %v58, %v59
    %61 = vadd.xlane.f32.xlu0 %v60
    %v62 = vpop.xlane.xlu0 %61
    %v63 = vadd.f32 %v57, %v62
    %64 = vst.msk [vmem:[%s3] sm:$0xff] %vm55, %v63
    // Predicated region
    $region22: #{tpu_custom_call.1} parent=1 // pred_check
      _
    $region23: #{tpu_custom_call.1} parent=1 // pred_check_branch
      %66 = sbr.rel (0) target = $region25
    $region24: #{tpu_custom_call.1} parent=1 // pred_region
      _
    $region25: #{tpu_custom_call.1} parent=1 // pred_fallthru
      _
    // Predicated region
    $region26: #{tpu_custom_call.1} parent=1 // pred_check
      _
    $region27: #{tpu_custom_call.1} parent=1 // pred_check_branch
      %68 = sbr.rel (0) target = $region29
    $region28: #{tpu_custom_call.1} parent=1 // pred_region
      _
    $region29: #{tpu_custom_call.1} parent=1 // pred_fallthru
      _
    // Predicated region
    $region30: #{tpu_custom_call.1} parent=1 // pred_check
      _
    $region31: #{tpu_custom_call.1} parent=1 // pred_check_branch
      %70 = sbr.rel (0) target = $region33
    $region32: #{tpu_custom_call.1} parent=1 // pred_region
      _
    $region33: #{tpu_custom_call.1} parent=1 // pred_fallthru
      _
    // Predicated region
    $region34: #{tpu_custom_call.1} parent=1 // pred_check
      _
    $region35: #{tpu_custom_call.1} parent=1 // pred_check_branch
      %72 = sbr.rel (0) target = $region37
    $region36: #{tpu_custom_call.1} parent=1 // pred_region
      _
    $region37: #{tpu_custom_call.1} parent=1 // pred_fallthru
      _
    %73 = vsyncpa [#allocation3], 1
    %74 = vsyncpa [#allocation5], 1

</llo_original>
